<compile_context>
chip_gen: v5e
topology: v5e:2x2
jax: 0.10.0
libtpu: 0.0.40
codegen_flags: <defaults>
</compile_context>

<pallas_src>
import functools
import math

import jax
import jax.numpy as jnp
from jax.experimental import pallas as pl
from jax.experimental.pallas import tpu as pltpu

_SUBLANE = {4: 8, 2: 16, 1: 32}  # sublane pack per itemsize


def _device_tuning():
    """Per-TPU-generation (per-buffer byte budget, vmem_limit_bytes)."""
    try:
        kind = jax.devices()[0].device_kind.lower()
    except Exception:
        kind = ""
    if "v6" in kind:
        # 4 live buffers x 4 MiB = 16 MiB < 32 MiB scoped default.
        return 4 << 20, None
    if "v7" in kind or "7x" in kind:
        # Bigger tiles to hide per-step overhead at 3.2 TB/s; raise scoped
        # limit explicitly (64 MiB physical VMEM on v7x).
        return 6 << 20, 48 << 20
    # v5e and older / unknown: stay well under the 16 MiB scoped default.
    return 2 << 20, None


# ---------------------------------------------------------------------------
# Path A: small per-sample slabs -> pack TB samples per grid step.
# ---------------------------------------------------------------------------
def _drop_path_batched_kernel(scale_ref, x_ref, o_ref):
    """(TB, T) tile: per-row scale (keep/keep_prob) broadcast over lanes."""
    o_ref[...] = (x_ref[...].astype(jnp.float32) * scale_ref[...]).astype(o_ref.dtype)


def _batched_tiles(B, F, itemsize, target_bytes):
    """Pick (TB, T): TB sublane-aligned (or == B), T multiple of 128 (or == F)."""
    sub = _SUBLANE.get(itemsize, 8)
    bytes_per_sample = F * itemsize

    if B <= sub:
        tb = B  # full batch dim is always a legal block dim
    else:
        fit = (target_bytes // max(1, bytes_per_sample)) // sub * sub
        tb = max(sub, min(fit, (B // sub) * sub))

    if tb * bytes_per_sample <= target_bytes:
        t = F
    else:
        t = max(128, (target_bytes // (tb * itemsize)) // 128 * 128)

    # Ensure >= 2 grid steps so a 2-TensorCore part (v7x) keeps both cores busy.
    if pl.cdiv(B, tb) * pl.cdiv(F, t) == 1:
        if F % 256 == 0 and F >= 256:
            t = F // 2
        elif tb > sub and tb % (2 * sub) == 0:
            tb = tb // 2
    return tb, t


def _drop_path_batched(x2, keep, inv_keep, target_bytes, vmem_limit):
    B, F = x2.shape
    itemsize = jnp.dtype(x2.dtype).itemsize
    tb, t = _batched_tiles(B, F, itemsize, target_bytes)

    # Per-sample scale folded on the host: 0 or 1/keep_prob, f32 (never bf16-rounded).
    scale = (keep.astype(jnp.float32) * jnp.float32(inv_keep)).reshape(B, 1)
    grid = (pl.cdiv(B, tb), pl.cdiv(F, t))

    return pl.pallas_call(
        _drop_path_batched_kernel,
        out_shape=jax.ShapeDtypeStruct((B, F), x2.dtype),
        grid_spec=pltpu.PrefetchScalarGridSpec(
            num_scalar_prefetch=0,
            grid=grid,
            in_specs=[pl.BlockSpec((tb, 1), lambda i, j: (i, 0)),
                      pl.BlockSpec((tb, t), lambda i, j: (i, j))],
            out_specs=pl.BlockSpec((tb, t), lambda i, j: (i, j)),
        ),
        compiler_params=pltpu.CompilerParams(
            dimension_semantics=("parallel", "parallel"),
            vmem_limit_bytes=vmem_limit),
    )(scale, x2)


# ---------------------------------------------------------------------------
# Path B: large per-sample slabs -> per-sample streaming; skip HBM reads of
# dropped samples via a data-dependent index_map on the scalar-prefetched
# keep flags (dropped tiles all map to block (0,0,0) -> no refetch).
# ---------------------------------------------------------------------------
def _drop_path_streamed_kernel(keep_ref, x_ref, o_ref, *, inv_keep):
    b = pl.program_id(0)
    k = keep_ref[b]  # SMEM scalar: 0 (drop) or 1 (keep)

    @pl.when(k != 0)
    def _():
        o_ref[...] = (x_ref[...].astype(jnp.float32)
                      * jnp.float32(inv_keep)).astype(o_ref.dtype)

    @pl.when(k == 0)
    def _():
        # Never read x for dropped samples; just write zeros.
        o_ref[...] = jnp.zeros_like(o_ref)


def _drop_path_streamed(x2, keep, inv_keep, target_bytes, vmem_limit):
    B, F = x2.shape                      # requires F % 128 == 0 (caller checks)
    itemsize = jnp.dtype(x2.dtype).itemsize
    sub = _SUBLANE.get(itemsize, 8)

    R = F // 128
    x3 = x2.reshape(B, R, 128)           # lane-dense view, free metadata change

    max_tr = max(1, target_bytes // (128 * itemsize))
    if R <= max_tr:
        tr = R
    else:
        tr = max(sub, (max_tr // sub) * sub)

    grid = (B, pl.cdiv(R, tr))
    kernel = functools.partial(_drop_path_streamed_kernel, inv_keep=inv_keep)

    def x_map(b, n, keep_ref):
        k = keep_ref[b]                  # dropped sample -> pinned to block (0,0,0)
        return (b * k, n * k, 0)

    out3 = pl.pallas_call(
        kernel,
        out_shape=jax.ShapeDtypeStruct((B, R, 128), x2.dtype),
        grid_spec=pltpu.PrefetchScalarGridSpec(
            num_scalar_prefetch=1,
            grid=grid,
            in_specs=[pl.BlockSpec((1, tr, 128), x_map)],
            out_specs=pl.BlockSpec((1, tr, 128), lambda b, n, keep_ref: (b, n, 0)),
        ),
        compiler_params=pltpu.CompilerParams(
            dimension_semantics=("parallel", "parallel"),
            vmem_limit_bytes=vmem_limit),
    )(keep, x3)
    return out3.reshape(B, F)


# ---------------------------------------------------------------------------
# Public wrapper + module mirror.
# ---------------------------------------------------------------------------
def drop_path(x, key, p: float = 0.5, training: bool = True):
    """Pallas DropPath.  Per-sample scale; keep_prob == p (matches the module)."""
    if (not training) or p <= 0.0:
        return x

    keep_prob = float(p)                 # the reference forward passes self.p here
    inv_keep = 1.0 / keep_prob

    B = x.shape[0]
    F = int(math.prod(x.shape[1:]))
    x2 = x.reshape(B, F)

    # Per-sample keep flags (Bernoulli(keep_prob)) drawn outside the kernel.
    keep = jax.random.bernoulli(key, p=keep_prob, shape=(B,)).astype(jnp.int32)

    itemsize = jnp.dtype(x.dtype).itemsize
    sub = _SUBLANE.get(itemsize, 8)
    target_bytes, vmem_limit = _device_tuning()

    bytes_per_sample = F * itemsize
    if (F % 128 == 0) and (min(B, sub) * bytes_per_sample > target_bytes):
        out2 = _drop_path_streamed(x2, keep, inv_keep, target_bytes, vmem_limit)
    else:
        out2 = _drop_path_batched(x2, keep, inv_keep, target_bytes, vmem_limit)
    return out2.reshape(x.shape)


class DropPathPallas:
    """Mirror of the PyTorch DropPath module (p=0.5 default)."""

    def __init__(self, p: float = 0.5, inplace: bool = False):
        self.p = p
        self.inplace = inplace  # no-op in JAX (functional); kept for parity
        self.training = True

    def __call__(self, x, key=None):
        if self.training and self.p > 0:
            if key is None:
                key = jax.random.PRNGKey(0)
            x = drop_path(x, key, p=self.p, training=True)
        return x

    def __repr__(self):
        return f"{self.__class__.__name__}(p={self.p})"


if __name__ == "__main__":
    root = jax.random.PRNGKey(0)
    xkey, mkey, skey = jax.random.split(root, 3)

    # (B, 1, 1) mask in the reference implies 3-D input: (batch, seq, hidden).
    B, N, D = 4, 8, 32
    x = jax.random.normal(xkey, (B, N, D), dtype=jnp.float32)

    module = DropPathPallas(p=0.5)
    out = jax.block_until_ready(module(x, mkey))

    # Sanity: each sample is either all-zero or exactly x / keep_prob.
    keep_prob = module.p
    for b in range(B):
        is_zero = bool(jnp.all(out[b] == 0.0))
        is_scaled = bool(jnp.allclose(out[b], x[b] / keep_prob, rtol=1e-6, atol=1e-6))
        assert is_zero or is_scaled, "per-sample mask is not a scaled bernoulli"

    # Also exercise the large-sample streaming path (read-skip for dropped
    # samples) with a tiny byte budget so it actually tiles, at small shapes.
    B2, N2, D2 = 4, 16, 128
    x_s = jax.random.normal(skey, (B2, N2, D2), dtype=jnp.float32)
    keep_s = jax.random.bernoulli(mkey, p=keep_prob, shape=(B2,)).astype(jnp.int32)
    out_s = _drop_path_streamed(x_s.reshape(B2, N2 * D2), keep_s,
                                1.0 / keep_prob, target_bytes=4 * 1024,
                                vmem_limit=None)
    out_s = jax.block_until_ready(out_s).reshape(B2, N2, D2)
    expected_s = x_s * (keep_s.astype(jnp.float32) / keep_prob)[:, None, None]
    assert bool(jnp.allclose(out_s, expected_s, rtol=1e-6, atol=1e-6)), \
        "streamed path mismatch"

    print("KERNEL_OK")
</pallas_src>

<mosaic_0001>
module attributes {stable_mosaic.version = 11 : i64} {
  func.func @_drop_path_batched_kernel(%arg0: i32, %arg1: i32, %arg2: memref<4x1xf32, #tpu.memory_space<vmem>>, %arg3: memref<4x128xf32, #tpu.memory_space<vmem>>, %arg4: memref<4x128xf32, #tpu.memory_space<vmem>>) attributes {dimension_semantics = [#tpu.dimension_semantics<parallel>, #tpu.dimension_semantics<parallel>], iteration_bounds = array<i64: 1, 2>, scalar_prefetch = 0 : i64, scratch_operands = 0 : i64, tpu.core_type = #tpu.core_type<tc>, window_params = [{transform_indices = @transform_0, window_bounds = array<i64: 4, 1>}, {transform_indices = @transform_1, window_bounds = array<i64: 4, 128>}, {transform_indices = @transform_2, window_bounds = array<i64: 4, 128>}]} {
    %c0 = arith.constant 0 : index
    %c0_0 = arith.constant 0 : index
    %0 = vector.load %arg3[%c0, %c0_0] : memref<4x128xf32, #tpu.memory_space<vmem>>, vector<4x128xf32>
    %c0_1 = arith.constant 0 : index
    %c0_2 = arith.constant 0 : index
    %1 = vector.load %arg2[%c0_1, %c0_2] : memref<4x1xf32, #tpu.memory_space<vmem>>, vector<4x1xf32>
    %2 = vector.broadcast %1 : vector<4x1xf32> to vector<4x128xf32>
    %3 = arith.mulf %0, %2 : vector<4x128xf32>
    %c0_3 = arith.constant 0 : index
    %c0_4 = arith.constant 0 : index
    %4 = vector.load %arg4[%c0_3, %c0_4] : memref<4x128xf32, #tpu.memory_space<vmem>>, vector<4x128xf32>
    tpu.vector_store %arg4[%c0_3, %c0_4], %3 {strides = array<i32>} : memref<4x128xf32, #tpu.memory_space<vmem>>, vector<4x128xf32>,
    return
  }
  func.func @transform_0(%arg0: i32, %arg1: i32) -> (i32, i32) {
    %c0_i32 = arith.constant 0 : i32
    %c0_i32_0 = arith.constant 0 : i32
    return %arg0, %c0_i32 : i32, i32
  }
  func.func @transform_1(%arg0: i32, %arg1: i32) -> (i32, i32) {
    %c0_i32 = arith.constant 0 : i32
    return %arg0, %arg1 : i32, i32
  }
  func.func @transform_2(%arg0: i32, %arg1: i32) -> (i32, i32) {
    %c0_i32 = arith.constant 0 : i32
    return %arg0, %arg1 : i32, i32
  }
}

</mosaic_0001>

<llo_original>
// kernel: tpu_custom_call.1
$region0: #{tpu_custom_call.1}
  #allocation0 [shape = 'u32[]', space=smem, size = 0x4, offset = 0x4, fixed_abs, tag = 'smem constant byte address 0x4 - core index']
  #allocation1 [shape = 'u32[72,128]{1,0:T(1,128)}', space=vmem, size = 0x9000, scoped, tag = 'internal scratch']
  %s0 = inlined_call_operand.vmem [shape: f32[4,1], index: 0, kind: input, shape index: {}]
  %s1 = inlined_call_operand.hbm [shape: f32[4,256], index: 1, kind: input, shape index: {}]
  %s2 = inlined_call_operand.hbm [shape: f32[4,256], index: 2, kind: output, shape index: {}]
  %s3 = sld [smem:[#allocation0]]
  $region45: #{tpu_custom_call.1} parent=0
    _
  %s5 = ssub.s32 1, %s3
  %s6 = scalar_select 0, %s5, %s3
  $region1: #{tpu_custom_call.1} parent=0
    #allocation2 [shape = 'u8[4096]{0}', space=vmem, size = 0x1000, scoped, tag = 'input window, operand 1']
    #allocation3 [shape = 's32[2]{0}', space=sflag, size = 0x8, scoped, tag = 'scoped memory for tpu_custom_call.1']
    #allocation4 [shape = 's32[2]{0}', space=sflag, size = 0x8, scoped, tag = 'scoped memory for tpu_custom_call.1']
    #allocation5 [shape = 'u8[4096]{0}', space=vmem, size = 0x1000, scoped, tag = 'output window, operand 0']
    %7 = vsyncpa [#allocation3], 0
    %s8 = scalar_lea.sflag [#allocation3], 1
    %9 = vsyncpa %s8, 0
    %10 = vsyncpa [#allocation4], 0
    %s11 = scalar_lea.sflag [#allocation4], 1
    %12 = vsyncpa %s11, 0
    loop: start=0, step=1, limit=4
    $region2: #{tpu_custom_call.1} parent=1 // loop_pre_header
      _
    $region3: #{tpu_custom_call.1} parent=1 // loop_header
      %s14 = sphi 0, %s18
      %p15 = scmp.ge.s32.totalorder %s14, 4
      %s21 = sphi 0, %s33
      %s22 = sphi 0, %s29
      %s23 = sphi 0, %s21
      %s24 = sphi 0, %s22
      %s25 = sphi 0, %s23
      %s26 = sphi 0, %s24
      %s36 = sphi 0, %s38
      %s39 = sphi 0, %s36
      %s40 = sphi 0, %s39
      %s56 = sphi 0, %s40
      %s64 = sphi 0, %s66
      %s67 = sphi 0, %s64
      %s68 = sphi 0, %s67
      %s84 = sphi 0, %s68
      %s92 = sphi 0, %s94
      %s95 = sphi 0, %s92
      %s96 = sphi 0, %s95
      %s112 = sphi 0, %s96
    $region4: #{tpu_custom_call.1} parent=1 // loop_header_branch
      %17 = sbr.rel (%p15) target = $region8
    $region5: #{tpu_custom_call.1} parent=1 // loop_body
      %s19 = ssub.s32 %s14, 1
      %s20 = ssub.s32 %s14, 2
      %s27 = sadd.s32 1, %s22
      %p28 = scmp.ge.s32.totalorder %s27, 2
      %s29 = scalar_select %p28, 0, %s27
      %s30 = sadd.s32 1, %s21
      %s31 = scalar_select %p28, %s30, %s21
      %p32 = scmp.ge.s32.totalorder %s31, 1
      %s33 = scalar_select %p32, 0, %s31
      %s34 = ssub.s32 %s21, %s33
      %p35 = scmp.eq.s32.totalorder %s34, 0
      %s37 = sadd.s32 %s36, 1
      %s38 = scalar_select %p35, %s36, %s37
      %p41 = pneg %p35
      %p42 = scmp.eq.s32.totalorder %s14, 1
      %p43 = por %p41, %p42
      %p44 = scmp.ne.s32.totalorder %s36, %s39
      %p45 = scmp.eq.s32.totalorder %s14, 0
      %p46 = por %p44, %p45
      %p47 = scmp.ne.s32.totalorder %s36, %s39
      %p48 = scmp.eq.s32.totalorder %s19, 1
      %p49 = por %p47, %p48
      %p50 = scmp.ne.s32.totalorder %s39, %s40
      %p51 = scmp.eq.s32.totalorder %s19, 0
      %p52 = por %p50, %p51
      %p53 = scmp.ne.s32.totalorder %s39, %s40
      %p54 = scmp.eq.s32.totalorder %s20, 1
      %p55 = por %p53, %p54
      %p57 = scmp.ne.s32.totalorder %s40, %s56
      %p58 = scmp.eq.s32.totalorder %s20, 0
      %p59 = por %p57, %p58
      %s60 = ssub.s32 %s21, %s33
      %s61 = ssub.s32 %s22, %s29
      %s62 = sor.u32 %s60, %s61
      %p63 = scmp.eq.s32.totalorder %s62, 0
      %s65 = sadd.s32 %s64, 1
      %s66 = scalar_select %p63, %s64, %s65
      %p69 = pneg %p63
      %p70 = scmp.eq.s32.totalorder %s14, 1
      %p71 = por %p69, %p70
      %p72 = scmp.ne.s32.totalorder %s64, %s67
      %p73 = scmp.eq.s32.totalorder %s14, 0
      %p74 = por %p72, %p73
      %p75 = scmp.ne.s32.totalorder %s64, %s67
      %p76 = scmp.eq.s32.totalorder %s19, 1
      %p77 = por %p75, %p76
      %p78 = scmp.ne.s32.totalorder %s67, %s68
      %p79 = scmp.eq.s32.totalorder %s19, 0
      %p80 = por %p78, %p79
      %p81 = scmp.ne.s32.totalorder %s67, %s68
      %p82 = scmp.eq.s32.totalorder %s20, 1
      %p83 = por %p81, %p82
      %p85 = scmp.ne.s32.totalorder %s68, %s84
      %p86 = scmp.eq.s32.totalorder %s20, 0
      %p87 = por %p85, %p86
      %s88 = ssub.s32 %s21, %s33
      %s89 = ssub.s32 %s22, %s29
      %s90 = sor.u32 %s88, %s89
      %p91 = scmp.eq.s32.totalorder %s90, 0
      %s93 = sadd.s32 %s92, 1
      %s94 = scalar_select %p91, %s92, %s93
      %p97 = pneg %p91
      %p98 = scmp.eq.s32.totalorder %s14, 1
      %p99 = por %p97, %p98
      %p100 = scmp.ne.s32.totalorder %s92, %s95
      %p101 = scmp.eq.s32.totalorder %s14, 0
      %p102 = por %p100, %p101
      %p103 = scmp.ne.s32.totalorder %s92, %s95
      %p104 = scmp.eq.s32.totalorder %s19, 1
      %p105 = por %p103, %p104
      %p106 = scmp.ne.s32.totalorder %s95, %s96
      %p107 = scmp.eq.s32.totalorder %s19, 0
      %p108 = por %p106, %p107
      %p109 = scmp.ne.s32.totalorder %s95, %s96
      %p110 = scmp.eq.s32.totalorder %s20, 1
      %p111 = por %p109, %p110
      %p113 = scmp.ne.s32.totalorder %s96, %s112
      %p114 = scmp.eq.s32.totalorder %s20, 0
      %p115 = por %p113, %p114
      %p116 = scmp.le.s32.totalorder 1, %s14
      %p117 = scmp.lt.s32.totalorder %s14, 3
      %p118 = pnand %p116, %p117
      %p119 = pneg %p118
      // Predicated region
      $region9: #{tpu_custom_call.1} parent=5 // pred_check
        _
      $region10: #{tpu_custom_call.1} parent=5 // pred_check_branch
        %121 = sbr.rel (%p118) target = $region12
      $region11: #{tpu_custom_call.1} parent=5 // pred_region
        %s122 = ssub.s32 %s14, 1
        // Predicated region
        $region13: #{tpu_custom_call.1} parent=11 // pred_check
          %p123 = pneg %p52
        $region14: #{tpu_custom_call.1} parent=11 // pred_check_branch
          %125 = sbr.rel (%p123) target = $region16
        $region15: #{tpu_custom_call.1} parent=11 // pred_region
          %p126 = scmp.lt.s32.totalorder %s23, 0
          %s127 = scalar_select %p126, %s23, 0
          %s128 = smul.addr %s127, 4
          %s129 = scalar_lea.vmem %s0, %s128
        $region16: #{tpu_custom_call.1} parent=11 // pred_fallthru
          _
      $region12: #{tpu_custom_call.1} parent=5 // pred_fallthru
        _
      %p130 = scmp.lt.s32.totalorder %s14, 2
      // Predicated region
      $region17: #{tpu_custom_call.1} parent=5 // pred_check
        %p131 = pneg %p130
      $region18: #{tpu_custom_call.1} parent=5 // pred_check_branch
        %133 = sbr.rel (%p131) target = $region20
      $region19: #{tpu_custom_call.1} parent=5 // pred_region
        // Predicated region
        $region21: #{tpu_custom_call.1} parent=19 // pred_check
          %p134 = pneg %p74
        $region22: #{tpu_custom_call.1} parent=19 // pred_check_branch
          %136 = sbr.rel (%p134) target = $region24
        $region23: #{tpu_custom_call.1} parent=19 // pred_region
          %s137 = sand.u32 %s64, 1
          %s138 = scalar_lea.sflag [#allocation3], %s137
          %s139 = sand.u32 %s64, 1
          %s140 = smul.addr %s139, 4
          %s141 = scalar_lea.vmem [#allocation2], %s140
          %143 = vsyncadd %s138, 0
          %s144 = smul.addr %s21, 2
          %s145 = sadd.s32 %s22, %s144
          %s146 = smul.addr %s145, 4
          %s147 = scalar_lea.hbm %s1, %s146
          %s149 = sshll.u32 %s147, 4
          %s150 = int_to_ptr.hbm [resolvable:$true] %s149
          %s151 = sshll.u32 %s141, 4
          %s152 = int_to_ptr.vmem [resolvable:$true] %s151
          %154 = dma.hbm_to_vmem [thread:$0]  %s150, 64, %s152, %s138
        $region24: #{tpu_custom_call.1} parent=19 // pred_fallthru
          _
      $region20: #{tpu_custom_call.1} parent=5 // pred_fallthru
        _
      %p155 = scmp.le.s32.totalorder 1, %s14
      %p156 = scmp.lt.s32.totalorder %s14, 3
      %p157 = pnand %p155, %p156
      %p158 = pneg %p157
      // Predicated region
      $region25: #{tpu_custom_call.1} parent=5 // pred_check
        _
      $region26: #{tpu_custom_call.1} parent=5 // pred_check_branch
        %160 = sbr.rel (%p157) target = $region28
      $region27: #{tpu_custom_call.1} parent=5 // pred_region
        %s161 = ssub.s32 %s14, 1
        %s162 = sand.u32 %s67, 1
        %s163 = scalar_lea.sflag [#allocation3], %s162
        %s164 = sand.u32 %s67, 1
        %s165 = smul.addr %s164, 4
        %s166 = scalar_lea.vmem [#allocation2], %s165
        // Predicated region
        $region29: #{tpu_custom_call.1} parent=27 // pred_check
          %p167 = pneg %p80
        $region30: #{tpu_custom_call.1} parent=27 // pred_check_branch
          %169 = sbr.rel (%p167) target = $region32
        $region31: #{tpu_custom_call.1} parent=27 // pred_region
          %171 = dma.done %s163, 64
        $region32: #{tpu_custom_call.1} parent=27 // pred_fallthru
          _
        %p172 = scmp.lt.s32.totalorder %s23, 0
        %s173 = scalar_select %p172, %s23, 0
        %s174 = smul.addr %s173, 4
        %s175 = scalar_lea.vmem %s0, %s174
        %p176 = pneg %p52
        %p177 = pneg %p49
        %s178 = sand.u32 %s67, 1
        %s179 = scalar_lea.sflag [#allocation3], %s178
        %s180 = sand.u32 %s67, 1
        %s181 = smul.addr %s180, 4
        %s182 = scalar_lea.vmem [#allocation2], %s181
        %p183 = pneg %p80
        %p184 = pneg %p77
        %p185 = pneg %p108
        %p186 = pneg %p105
        %s187 = sand.u32 %s95, 1
        %s188 = scalar_lea.sflag [#allocation4], %s187
        %s189 = sand.u32 %s95, 1
        %s190 = smul.addr %s189, 4
        %s191 = scalar_lea.vmem [#allocation5], %s190
        %p192 = scmp.lt.s32.totalorder %s23, 0
        %s193 = scalar_select %p192, %s23, 0
        %s194 = smul.addr %s193, 4
        %s195 = scalar_lea.vmem %s0, %s194
        %v196 = vld [vmem:[%s166] sm:$0xf]
        %v197 = vld [vmem:[%s195] sm:$0xf]
        %199 = vset.pattern.permute.xlu0 0
        %200 = vperm.xlu0 %199, %v197
        %v201 = vpop.permute.xlu0 %200
        %v203 = vmul.f32 %v196, %v201
        %204 = vst [vmem:[%s191] sm:$0xf] %v203
        %s205 = sand.u32 %s95, 1
        %s206 = scalar_lea.sflag [#allocation4], %s205
        %s207 = sand.u32 %s95, 1
        %s208 = smul.addr %s207, 4
        %s209 = scalar_lea.vmem [#allocation5], %s208
        // Predicated region
        $region33: #{tpu_custom_call.1} parent=27 // pred_check
          %p210 = pneg %p105
        $region34: #{tpu_custom_call.1} parent=27 // pred_check_branch
          %212 = sbr.rel (%p210) target = $region36
        $region35: #{tpu_custom_call.1} parent=27 // pred_region
          %214 = vsyncadd %s206, 0
          %s215 = smul.addr %s23, 2
          %s216 = sadd.s32 %s24, %s215
          %s217 = smul.addr %s216, 4
          %s218 = scalar_lea.hbm %s2, %s217
          %s220 = sshll.u32 %s209, 4
          %s221 = int_to_ptr.vmem [resolvable:$true] %s220
          %s222 = sshll.u32 %s218, 4
          %s223 = int_to_ptr.hbm [resolvable:$true] %s222
          %225 = dma.vmem_to_hbm [thread:$0]  %s221, 64, %s223, %s206
        $region36: #{tpu_custom_call.1} parent=27 // pred_fallthru
          _
      $region28: #{tpu_custom_call.1} parent=5 // pred_fallthru
        _
      %p226 = scmp.le.s32.totalorder 2, %s14
      // Predicated region
      $region37: #{tpu_custom_call.1} parent=5 // pred_check
        %p227 = pneg %p226
      $region38: #{tpu_custom_call.1} parent=5 // pred_check_branch
        %229 = sbr.rel (%p227) target = $region40
      $region39: #{tpu_custom_call.1} parent=5 // pred_region
        %s230 = ssub.s32 %s14, 2
        // Predicated region
        $region41: #{tpu_custom_call.1} parent=39 // pred_check
          %p231 = pneg %p111
        $region42: #{tpu_custom_call.1} parent=39 // pred_check_branch
          %233 = sbr.rel (%p231) target = $region44
        $region43: #{tpu_custom_call.1} parent=39 // pred_region
          %s234 = sand.u32 %s96, 1
          %s235 = scalar_lea.sflag [#allocation4], %s234
          %s236 = sand.u32 %s96, 1
          %s237 = smul.addr %s236, 4
          %s238 = scalar_lea.vmem [#allocation5], %s237
          %240 = dma.done %s235, 64
        $region44: #{tpu_custom_call.1} parent=39 // pred_fallthru
          _
      $region40: #{tpu_custom_call.1} parent=5 // pred_fallthru
        _
    $region6: #{tpu_custom_call.1} parent=1 // loop_footer
      %s18 = sadd.s32 1, %s14
    $region7: #{tpu_custom_call.1} parent=1 // loop_footer_branch
      %13 = sbr.rel target = $region3
    $region8: #{tpu_custom_call.1} parent=1 // loop_exit
      _
    %241 = vsyncpa [#allocation3], 1
    %s242 = scalar_lea.sflag [#allocation3], 1
    %243 = vsyncpa %s242, 1
    %244 = vsyncpa [#allocation4], 1
    %s245 = scalar_lea.sflag [#allocation4], 1
    %246 = vsyncpa %s245, 1

</llo_original>
